<compile_context>
chip_gen: v5e
topology: v5e:2x2
jax: 0.10.0
libtpu: 0.0.40
codegen_flags: <defaults>
</compile_context>

<pallas_src>
import functools
import numpy as np
import jax
import jax.numpy as jnp
from jax import lax
from jax.experimental import pallas as pl
from jax.experimental.pallas import tpu as pltpu


# ---------------------------------------------------------------------------
# Kernel 1: streaming v_head   rewards[b, s] = sum_h hidden[b, s, h] * w[h]
# ---------------------------------------------------------------------------
def _vhead_kernel(w_ref, h_ref, rew_ref):
    # w stays resident in VMEM across grid steps (constant index_map).
    w = w_ref[...].astype(jnp.float32)                    # (1, H)
    h = h_ref[...].astype(jnp.float32)                    # (batch, seq_tile, H); f32 accumulation
    # H -> 1 reduction: VPU multiply + lane reduction (NOT an MXU dot with N=1).
    rew_ref[...] = jnp.sum(h * w[None, :, :], axis=-1)    # (batch, seq_tile), lane-dense on seq


def _pick_seq_tile(batch, seq, hdim, h_itemsize, budget_bytes=8 << 20):
    """Largest seq tile (multiple of 128, divides seq) whose block fits `budget`."""
    if seq % 128 != 0:
        return seq                                # full-seq block is always legal
    per_pos = batch * hdim * (h_itemsize + 4)     # streamed block + f32 intermediate
    for tile in (2048, 1024, 512, 256, 128):
        if seq % tile == 0 and tile * per_pos <= budget_bytes:
            return tile
    return 128


def _vhead_rewards(hidden_states, v_head_w, *, seq_tile=None):
    batch, seq, hdim = hidden_states.shape
    if seq_tile is None:
        seq_tile = _pick_seq_tile(batch, seq, hdim, hidden_states.dtype.itemsize)
    return pl.pallas_call(
        _vhead_kernel,
        grid=(seq // seq_tile,),
        in_specs=[
            pl.BlockSpec((1, hdim), lambda s: (0, 0)),                   # resident weight
            pl.BlockSpec((batch, seq_tile, hdim), lambda s: (0, s, 0)),  # streamed hidden tiles
        ],
        out_specs=pl.BlockSpec((batch, seq_tile), lambda s: (0, s)),
        out_shape=jax.ShapeDtypeStruct((batch, seq), jnp.float32),
        compiler_params=pltpu.CompilerParams(
            dimension_semantics=("parallel",),        # v7x: split seq tiles across both TCs
            vmem_limit_bytes=48 * 1024 * 1024,        # above v5e/v6e/v7x scoped defaults, < 64 MiB phys
        ),
    )(v_head_w, hidden_states)


# ---------------------------------------------------------------------------
# Kernel 2: pairwise loss / end-score epilogue (tiny, everything already in VMEM)
# ---------------------------------------------------------------------------
def _loss_kernel(c_rew_ref, r_rew_ref, div_ref, end_ref, cpos_ref, rpos_ref,
                 loss_ref, cms_ref, rms_ref):
    bs, seq = c_rew_ref.shape
    c_rew = c_rew_ref[...]                                # (bs, seq) f32
    r_rew = r_rew_ref[...]
    iota = lax.broadcasted_iota(jnp.int32, (bs, seq), 1)

    div = div_ref[...]                                    # (bs, 1) int32
    end = end_ref[...]
    trunc_mask = (iota >= div) & (iota < end)

    diff = c_rew - r_rew
    log_sig = jnp.minimum(diff, 0.0) - jnp.log1p(jnp.exp(-jnp.abs(diff)))   # stable logsigmoid
    cnt = (end - div).astype(jnp.float32)
    per_loss = -jnp.sum(jnp.where(trunc_mask, log_sig, 0.0), axis=1, keepdims=True) / cnt

    loss_ref[...] = jnp.sum(per_loss, axis=0, keepdims=True) / float(bs)    # (1, 1)
    cms_ref[...] = jnp.sum(jnp.where(iota == cpos_ref[...], c_rew, 0.0),
                           axis=1, keepdims=True)                           # (bs, 1)
    rms_ref[...] = jnp.sum(jnp.where(iota == rpos_ref[...], r_rew, 0.0),
                           axis=1, keepdims=True)                           # (bs, 1)


# ---------------------------------------------------------------------------
# Wrapper: index logic on ids (pure int32 math, hoisted out of the kernels)
# ---------------------------------------------------------------------------
def _pair_indices(c_ids, r_ids, pad_id, num_pad):
    """Vectorized replica of the per-row torch nonzero()/item() index logic."""
    bs, seq = c_ids.shape
    pos = jnp.arange(seq, dtype=jnp.int32)[None, :]

    def kth_pad(ids):
        is_pad = ids == pad_id
        cum = jnp.cumsum(is_pad.astype(jnp.int32), axis=1)
        hit = is_pad & (cum == (num_pad + 1))
        return jnp.min(jnp.where(hit, pos, seq), axis=1)   # == seq if fewer than num_pad+1 pads

    c_ind = kth_pad(c_ids)
    r_ind_pad = kth_pad(r_ids)

    diverge = c_ids != r_ids
    first_div = jnp.min(jnp.where(diverge, pos, seq), axis=1)
    has_div = first_div < seq

    r_ind = jnp.where(has_div, r_ind_pad, c_ind)
    end_ind = jnp.where(has_div, jnp.maximum(c_ind, r_ind_pad), seq)
    div_ind = jnp.where(has_div, first_div, seq - 1)

    c_pos = (c_ind - 1) % seq          # wrap like torch's index -1 when c_ind == 0
    r_pos = (r_ind - 1) % seq

    as_col = lambda x: x.astype(jnp.int32).reshape(bs, 1)
    return as_col(div_ind), as_col(end_ind), as_col(c_pos), as_col(r_pos)


def reward_model_forward(input_ids, hidden_states, v_head_w, *,
                         pad_id=0, num_padding_at_beginning=0, seq_tile=None):
    batch, seq = input_ids.shape
    assert batch % 2 == 0
    bs = batch // 2

    # Streaming v_head over the full (chosen + rejected) batch.
    rewards = _vhead_rewards(hidden_states, v_head_w, seq_tile=seq_tile)   # (batch, seq) f32

    div_ind, end_ind, c_pos, r_pos = _pair_indices(
        input_ids[:bs], input_ids[bs:], pad_id, num_padding_at_beginning)

    loss, cms, rms = pl.pallas_call(
        _loss_kernel,
        grid=(1,),
        in_specs=[
            pl.BlockSpec((bs, seq), lambda i: (0, 0)),
            pl.BlockSpec((bs, seq), lambda i: (0, 0)),
            pl.BlockSpec((bs, 1), lambda i: (0, 0)),
            pl.BlockSpec((bs, 1), lambda i: (0, 0)),
            pl.BlockSpec((bs, 1), lambda i: (0, 0)),
            pl.BlockSpec((bs, 1), lambda i: (0, 0)),
        ],
        out_specs=[
            pl.BlockSpec((1, 1), lambda i: (0, 0)),
            pl.BlockSpec((bs, 1), lambda i: (0, 0)),
            pl.BlockSpec((bs, 1), lambda i: (0, 0)),
        ],
        out_shape=[
            jax.ShapeDtypeStruct((1, 1), jnp.float32),
            jax.ShapeDtypeStruct((bs, 1), jnp.float32),
            jax.ShapeDtypeStruct((bs, 1), jnp.float32),
        ],
        compiler_params=pltpu.CompilerParams(dimension_semantics=("arbitrary",)),
    )(rewards[:bs], rewards[bs:], div_ind, end_ind, c_pos, r_pos)

    return {
        "loss": loss[0, 0],
        "chosen_mean_scores": cms[:, 0],
        "rejected_mean_scores": rms[:, 0],
    }


# ---------------------------------------------------------------------------
# Pure-numpy replica of the PyTorch RewardModel.forward loop (reference).
# ---------------------------------------------------------------------------
def _ref_forward(input_ids, hidden_f32, v_head_w, pad_id, num_pad):
    ids = np.asarray(input_ids)
    h = np.asarray(hidden_f32, dtype=np.float32)
    w = np.asarray(v_head_w, dtype=np.float32)
    rewards = (h * w[0][None, None, :]).sum(-1)
    batch, seq_len = ids.shape
    bs = batch // 2
    loss = 0.0
    cms, rms = [], []
    for i in range(bs):
        cid, rid = ids[i], ids[bs + i]
        crw, rrw = rewards[i], rewards[bs + i]
        c_pads = np.nonzero(cid == pad_id)[0]
        c_ind = int(c_pads[num_pad]) if len(c_pads) > num_pad else seq_len
        div = np.nonzero(cid != rid)[0]
        if len(div) == 0:
            end_ind = seq_len
            div_ind = end_ind - 1
            r_ind = c_ind
        else:
            r_pads = np.nonzero(rid == pad_id)[0]
            r_ind = int(r_pads[num_pad]) if len(r_pads) > num_pad else seq_len
            end_ind = max(c_ind, r_ind)
            div_ind = int(div[0])
        d = crw[div_ind:end_ind] - rrw[div_ind:end_ind]
        ls = np.minimum(d, 0.0) - np.log1p(np.exp(-np.abs(d)))
        loss += -ls.mean()
        cms.append(crw[c_ind - 1])
        rms.append(rrw[r_ind - 1])
    return loss / bs, np.array(cms, np.float32), np.array(rms, np.float32)


if __name__ == "__main__":
    PAD_ID = 0
    NUM_PAD = 0
    bs, seq_len, hidden = 2, 256, 128
    batch = 2 * bs

    key = jax.random.PRNGKey(0)
    k_tok, k_h, k_w = jax.random.split(key, 3)

    # Build chosen / rejected token ids: shared prefix, one diverging pair, one identical pair.
    base = np.asarray(jax.random.randint(k_tok, (bs, seq_len), 1, 1000, dtype=jnp.int32))
    chosen = base.copy()
    rejected = base.copy()
    # pair 0: diverges at position 50; chosen pads from 100, rejected pads from 110
    chosen[0, 100:] = PAD_ID
    rejected[0, 50:] = (rejected[0, 50:] % 997) + 4      # guaranteed to diverge, never PAD
    rejected[0, 110:] = PAD_ID
    # pair 1: identical chosen / rejected ids (no divergence), pads from 90
    chosen[1, 90:] = PAD_ID
    rejected[1, 90:] = PAD_ID
    input_ids = jnp.asarray(np.concatenate([chosen, rejected], axis=0), dtype=jnp.int32)

    # Synthetic transformer output hidden states (bf16 path) + deterministic v_head weight.
    hidden_f32 = jax.random.normal(k_h, (batch, seq_len, hidden), dtype=jnp.float32)
    hidden_bf16 = hidden_f32.astype(jnp.bfloat16)         # halves HBM traffic in the kernel
    v_head_w = (jax.random.normal(k_w, (1, hidden), dtype=jnp.float32) /
                np.sqrt(hidden)).astype(jnp.float32)

    out = reward_model_forward(input_ids, hidden_bf16, v_head_w,
                               pad_id=PAD_ID, num_padding_at_beginning=NUM_PAD,
                               seq_tile=128)              # 2 seq tiles -> exercises the pipeline
    jax.block_until_ready(out)

    # Reference uses the same bf16-quantized hidden states, accumulated in f32.
    ref_loss, ref_cms, ref_rms = _ref_forward(
        input_ids, np.asarray(hidden_bf16.astype(jnp.float32)), v_head_w, PAD_ID, NUM_PAD)
    np.testing.assert_allclose(np.asarray(out["loss"]), ref_loss, rtol=1e-4, atol=1e-4)
    np.testing.assert_allclose(np.asarray(out["chosen_mean_scores"]), ref_cms, rtol=1e-4, atol=1e-4)
    np.testing.assert_allclose(np.asarray(out["rejected_mean_scores"]), ref_rms, rtol=1e-4, atol=1e-4)

    print("KERNEL_OK")
</pallas_src>

<mosaic_0001>
module attributes {stable_mosaic.version = 11 : i64} {
  func.func @_vhead_kernel(%arg0: i32, %arg1: memref<1x128xf32, #tpu.memory_space<vmem>>, %arg2: memref<4x128x128xbf16, #tpu.memory_space<vmem>>, %arg3: memref<4x128xf32, #tpu.memory_space<vmem>>) attributes {dimension_semantics = [#tpu.dimension_semantics<parallel>], iteration_bounds = array<i64: 2>, scalar_prefetch = 0 : i64, scratch_operands = 0 : i64, tpu.core_type = #tpu.core_type<tc>, window_params = [{pipeline_mode = #tpu.pipeline_mode<synchronous>, transform_indices = @transform_0, window_bounds = array<i64: 1, 128>}, {transform_indices = @transform_1, window_bounds = array<i64: 4, 128, 128>}, {transform_indices = @transform_2, window_bounds = array<i64: 4, 128>}]} {
    %c0 = arith.constant 0 : index
    %c0_0 = arith.constant 0 : index
    %0 = vector.load %arg1[%c0, %c0_0] : memref<1x128xf32, #tpu.memory_space<vmem>>, vector<1x128xf32>
    %c0_1 = arith.constant 0 : index
    %c0_2 = arith.constant 0 : index
    %c0_3 = arith.constant 0 : index
    %1 = vector.load %arg2[%c0_1, %c0_2, %c0_3] : memref<4x128x128xbf16, #tpu.memory_space<vmem>>, vector<4x128x128xbf16>
    %2 = arith.extf %1 : vector<4x128x128xbf16> to vector<4x128x128xf32>
    %3 = vector.shape_cast %0 : vector<1x128xf32> to vector<1x1x128xf32>
    %4 = vector.broadcast %3 : vector<1x1x128xf32> to vector<4x128x128xf32>
    %5 = arith.mulf %2, %4 : vector<4x128x128xf32>
    %cst = arith.constant dense<0.000000e+00> : vector<4x128xf32>
    %6 = vector.multi_reduction <add>, %5, %cst [2] : vector<4x128x128xf32> to vector<4x128xf32>
    %c0_4 = arith.constant 0 : index
    %c0_5 = arith.constant 0 : index
    %7 = vector.load %arg3[%c0_4, %c0_5] : memref<4x128xf32, #tpu.memory_space<vmem>>, vector<4x128xf32>
    tpu.vector_store %arg3[%c0_4, %c0_5], %6 {strides = array<i32>} : memref<4x128xf32, #tpu.memory_space<vmem>>, vector<4x128xf32>,
    return
  }
  func.func @transform_0(%arg0: i32) -> (i32, i32) {
    %c0_i32 = arith.constant 0 : i32
    %c0_i32_0 = arith.constant 0 : i32
    %c0_i32_1 = arith.constant 0 : i32
    return %c0_i32, %c0_i32_0 : i32, i32
  }
  func.func @transform_1(%arg0: i32) -> (i32, i32, i32) {
    %c0_i32 = arith.constant 0 : i32
    %c0_i32_0 = arith.constant 0 : i32
    %c0_i32_1 = arith.constant 0 : i32
    return %c0_i32, %arg0, %c0_i32_0 : i32, i32, i32
  }
  func.func @transform_2(%arg0: i32) -> (i32, i32) {
    %c0_i32 = arith.constant 0 : i32
    %c0_i32_0 = arith.constant 0 : i32
    return %c0_i32, %arg0 : i32, i32
  }
}

</mosaic_0001>

<llo_original>
// kernel: tpu_custom_call.1
$region0: #{tpu_custom_call.1}
  #allocation0 [shape = 'u32[]', space=smem, size = 0x4, offset = 0x4, fixed_abs, tag = 'smem constant byte address 0x4 - core index']
  #allocation1 [shape = 'u32[72,128]{1,0:T(1,128)}', space=vmem, size = 0x9000, scoped, tag = 'internal scratch']
  #allocation8 [shape = 's32[]', space=sflag, size = 0x4, offset = 0, fixed_abs, tag = 'sflag constant byte address 0x0 - dummy sync flag']
  %s0 = inlined_call_operand.hbm [shape: f32[1,128], index: 0, kind: input, shape index: {}]
  %s1 = inlined_call_operand.hbm [shape: bf16[4,256,128], index: 1, kind: input, shape index: {}]
  %s2 = inlined_call_operand.hbm [shape: f32[4,256], index: 2, kind: output, shape index: {}]
  %s3 = sld [smem:[#allocation0]]
  $region49: #{tpu_custom_call.1} parent=0
    _
  %s5 = ssub.s32 1, %s3
  %s6 = scalar_select 0, %s5, %s3
  $region1: #{tpu_custom_call.1} parent=0
    #allocation2 [shape = 'u8[512]{0}', space=vmem, size = 0x400, scoped, tag = 'input window, operand 0, single buffered']
    #allocation3 [shape = 's32[2]{0}', space=sflag, size = 0x8, scoped, tag = 'scoped memory for tpu_custom_call.1']
    #allocation4 [shape = 's32[2]{0}', space=sflag, size = 0x8, scoped, tag = 'scoped memory for tpu_custom_call.1']
    #allocation5 [shape = 'u8[262144]{0}', space=vmem, size = 0x40000, scoped, tag = 'input window, operand 1']
    #allocation6 [shape = 's32[2]{0}', space=sflag, size = 0x8, scoped, tag = 'scoped memory for tpu_custom_call.1']
    #allocation7 [shape = 'u8[4096]{0}', space=vmem, size = 0x1000, scoped, tag = 'output window, operand 0']
    %7 = vsyncpa [#allocation3], 0
    %8 = vsyncpa [#allocation6], 0
    %s9 = scalar_lea.sflag [#allocation6], 1
    %10 = vsyncpa %s9, 0
    %11 = vsyncpa [#allocation4], 0
    %s12 = scalar_lea.sflag [#allocation4], 1
    %13 = vsyncpa %s12, 0
    loop: start=0, step=1, limit=4
    $region2: #{tpu_custom_call.1} parent=1 // loop_pre_header
      _
    $region3: #{tpu_custom_call.1} parent=1 // loop_header
      %s15 = sphi 0, %s19
      %p16 = scmp.ge.s32.totalorder %s15, 4
      %s23 = sphi 0, %s23
      %s25 = sphi 0, %s23
      %s26 = sphi 0, %s25
      %s40 = sphi 0, %s26
      %s46 = sphi 0, %s48
      %s49 = sphi 0, %s46
      %s50 = sphi 0, %s49
      %s66 = sphi 0, %s50
      %s72 = sphi 0, %s74
      %s75 = sphi 0, %s72
      %s76 = sphi 0, %s75
      %s92 = sphi 0, %s76
    $region4: #{tpu_custom_call.1} parent=1 // loop_header_branch
      %18 = sbr.rel (%p16) target = $region8
    $region5: #{tpu_custom_call.1} parent=1 // loop_body
      %s20 = ssub.s32 %s15, 1
      %s21 = ssub.s32 %s15, 2
      %s22 = sadd.s32 %s15, 1
      %s24 = sadd.s32 %s23, 1
      %p27 = scmp.eq.s32.totalorder %s15, 1
      %p28 = scmp.ne.s32.totalorder %s23, %s25
      %p29 = scmp.eq.s32.totalorder %s15, 0
      %p30 = por %p28, %p29
      %p31 = scmp.ne.s32.totalorder %s23, %s25
      %p32 = scmp.eq.s32.totalorder %s20, 1
      %p33 = por %p31, %p32
      %p34 = scmp.ne.s32.totalorder %s25, %s26
      %p35 = scmp.eq.s32.totalorder %s20, 0
      %p36 = por %p34, %p35
      %p37 = scmp.ne.s32.totalorder %s25, %s26
      %p38 = scmp.eq.s32.totalorder %s21, 1
      %p39 = por %p37, %p38
      %p41 = scmp.ne.s32.totalorder %s26, %s40
      %p42 = scmp.eq.s32.totalorder %s21, 0
      %p43 = por %p41, %p42
      %s44 = ssub.s32 %s15, %s22
      %p45 = scmp.eq.s32.totalorder %s44, 0
      %s47 = sadd.s32 %s46, 1
      %s48 = scalar_select %p45, %s46, %s47
      %p51 = pneg %p45
      %p52 = scmp.eq.s32.totalorder %s15, 1
      %p53 = por %p51, %p52
      %p54 = scmp.ne.s32.totalorder %s46, %s49
      %p55 = scmp.eq.s32.totalorder %s15, 0
      %p56 = por %p54, %p55
      %p57 = scmp.ne.s32.totalorder %s46, %s49
      %p58 = scmp.eq.s32.totalorder %s20, 1
      %p59 = por %p57, %p58
      %p60 = scmp.ne.s32.totalorder %s49, %s50
      %p61 = scmp.eq.s32.totalorder %s20, 0
      %p62 = por %p60, %p61
      %p63 = scmp.ne.s32.totalorder %s49, %s50
      %p64 = scmp.eq.s32.totalorder %s21, 1
      %p65 = por %p63, %p64
      %p67 = scmp.ne.s32.totalorder %s50, %s66
      %p68 = scmp.eq.s32.totalorder %s21, 0
      %p69 = por %p67, %p68
      %s70 = ssub.s32 %s15, %s22
      %p71 = scmp.eq.s32.totalorder %s70, 0
      %s73 = sadd.s32 %s72, 1
      %s74 = scalar_select %p71, %s72, %s73
      %p77 = pneg %p71
      %p78 = scmp.eq.s32.totalorder %s15, 1
      %p79 = por %p77, %p78
      %p80 = scmp.ne.s32.totalorder %s72, %s75
      %p81 = scmp.eq.s32.totalorder %s15, 0
      %p82 = por %p80, %p81
      %p83 = scmp.ne.s32.totalorder %s72, %s75
      %p84 = scmp.eq.s32.totalorder %s20, 1
      %p85 = por %p83, %p84
      %p86 = scmp.ne.s32.totalorder %s75, %s76
      %p87 = scmp.eq.s32.totalorder %s20, 0
      %p88 = por %p86, %p87
      %p89 = scmp.ne.s32.totalorder %s75, %s76
      %p90 = scmp.eq.s32.totalorder %s21, 1
      %p91 = por %p89, %p90
      %p93 = scmp.ne.s32.totalorder %s76, %s92
      %p94 = scmp.eq.s32.totalorder %s21, 0
      %p95 = por %p93, %p94
      %p96 = scmp.le.s32.totalorder 1, %s15
      %p97 = scmp.lt.s32.totalorder %s15, 3
      %p98 = pnand %p96, %p97
      %p99 = pneg %p98
      // Predicated region
      $region9: #{tpu_custom_call.1} parent=5 // pred_check
        _
      $region10: #{tpu_custom_call.1} parent=5 // pred_check_branch
        %101 = sbr.rel (%p98) target = $region12
      $region11: #{tpu_custom_call.1} parent=5 // pred_region
        %s102 = ssub.s32 %s15, 1
        // Predicated region
        $region13: #{tpu_custom_call.1} parent=11 // pred_check
          %p103 = pneg %p36
        $region14: #{tpu_custom_call.1} parent=11 // pred_check_branch
          %105 = sbr.rel (%p103) target = $region16
        $region15: #{tpu_custom_call.1} parent=11 // pred_region
          %107 = vsyncadd [#allocation3], 0
          %s109 = sshll.u32 %s0, 4
          %s110 = int_to_ptr.hbm [resolvable:$true] %s109
          %s111 = sshll.u32 [#allocation2], 4
          %s112 = int_to_ptr.vmem [resolvable:$true] %s111
          %114 = dma.hbm_to_vmem [thread:$0]  %s110, 16, %s112, [#allocation3]
        $region16: #{tpu_custom_call.1} parent=11 // pred_fallthru
          _
      $region12: #{tpu_custom_call.1} parent=5 // pred_fallthru
        _
      %p115 = scmp.lt.s32.totalorder %s15, 2
      // Predicated region
      $region17: #{tpu_custom_call.1} parent=5 // pred_check
        %p116 = pneg %p115
      $region18: #{tpu_custom_call.1} parent=5 // pred_check_branch
        %118 = sbr.rel (%p116) target = $region20
      $region19: #{tpu_custom_call.1} parent=5 // pred_region
        // Predicated region
        $region21: #{tpu_custom_call.1} parent=19 // pred_check
          %p119 = pneg %p56
        $region22: #{tpu_custom_call.1} parent=19 // pred_check_branch
          %121 = sbr.rel (%p119) target = $region24
        $region23: #{tpu_custom_call.1} parent=19 // pred_region
          #allocation9 [shape = 'u32[6]{0}', space=smem, size = 0x18, scoped, tag = 'DMA stride descriptor']
          %s122 = sand.u32 %s46, 1
          %s123 = scalar_lea.sflag [#allocation6], %s122
          %s124 = sand.u32 %s46, 1
          %s125 = smul.addr %s124, 256
          %s126 = scalar_lea.vmem [#allocation5], %s125
          %s127 = smul.u32 16, %s15
          %129 = vsyncadd %s123, 0
          %s130 = smul.addr %s127, 4
          %s131 = scalar_lea.hbm %s1, %s130
          %s133 = sshll.u32 1, 14
          %s134 = sxor.u32 4294967295, %s133
          %s136 = sld [smem:[#allocation0]]
          %s137 = sadd.s32 2, %s136
          %s139 = sshll.u32 7, 26
          %s140 = sxor.u32 4294967295, %s139
          %s141 = sand.u32 0, %s140
          %s142 = sshll.u32 %s137, 26
          %s143 = sor.u32 %s141, %s142
          %s144 = sshll.u32 %s131, 4
          %s145 = int_to_ptr.hbm [resolvable:$true] %s144
          %s146 = sshll.u32 %s126, 4
          %s147 = int_to_ptr.vmem [resolvable:$true] %s146
          %153 = sst [smem:[#allocation9]] 2048
          %s154 = scalar_lea.smem [#allocation9], 1
          %155 = sst [smem:[%s154]] 1024
          %s156 = scalar_lea.smem [#allocation9], 2
          %157 = sst [smem:[%s156]] 16
          %s158 = scalar_lea.smem [#allocation9], 3
          %159 = sst [smem:[%s158]] 64
          %s160 = scalar_lea.smem [#allocation9], 4
          %161 = sst [smem:[%s160]] 64
          %s162 = scalar_lea.smem [#allocation9], 5
          %163 = sst [smem:[%s162]] 4
          %165 = dma.general %s145, 4096, %s147, %s123, [#allocation8], [#allocation9], %s143, 0
        $region24: #{tpu_custom_call.1} parent=19 // pred_fallthru
          _
      $region20: #{tpu_custom_call.1} parent=5 // pred_fallthru
        _
      %p166 = scmp.le.s32.totalorder 1, %s15
      %p167 = scmp.lt.s32.totalorder %s15, 3
      %p168 = pnand %p166, %p167
      %p169 = pneg %p168
      // Predicated region
      $region25: #{tpu_custom_call.1} parent=5 // pred_check
        _
      $region26: #{tpu_custom_call.1} parent=5 // pred_check_branch
        %171 = sbr.rel (%p168) target = $region28
      $region27: #{tpu_custom_call.1} parent=5 // pred_region
        %s172 = ssub.s32 %s15, 1
        // Predicated region
        $region29: #{tpu_custom_call.1} parent=27 // pred_check
          %p173 = pneg %p36
        $region30: #{tpu_custom_call.1} parent=27 // pred_check_branch
          %175 = sbr.rel (%p173) target = $region32
        $region31: #{tpu_custom_call.1} parent=27 // pred_region
          %177 = dma.done [#allocation3], 16
        $region32: #{tpu_custom_call.1} parent=27 // pred_fallthru
          _
        %s178 = sand.u32 %s49, 1
        %s179 = scalar_lea.sflag [#allocation6], %s178
        %s180 = sand.u32 %s49, 1
        %s181 = smul.addr %s180, 256
        %s182 = scalar_lea.vmem [#allocation5], %s181
        // Predicated region
        $region33: #{tpu_custom_call.1} parent=27 // pred_check
          %p183 = pneg %p62
        $region34: #{tpu_custom_call.1} parent=27 // pred_check_branch
          %185 = sbr.rel (%p183) target = $region36
        $region35: #{tpu_custom_call.1} parent=27 // pred_region
          %187 = dma.done %s179, 4096
        $region36: #{tpu_custom_call.1} parent=27 // pred_fallthru
          _
        %p188 = pneg %p36
        %p189 = pneg %p33
        %s190 = sand.u32 %s49, 1
        %s191 = scalar_lea.sflag [#allocation6], %s190
        %s192 = sand.u32 %s49, 1
        %s193 = smul.addr %s192, 256
        %s194 = scalar_lea.vmem [#allocation5], %s193
        %p195 = pneg %p62
        %p196 = pneg %p59
        %p197 = pneg %p88
        %p198 = pneg %p85
        %s199 = sand.u32 %s75, 1
        %s200 = scalar_lea.sflag [#allocation4], %s199
        %s201 = sand.u32 %s75, 1
        %s202 = smul.addr %s201, 4
        %s203 = scalar_lea.vmem [#allocation7], %s202
        %s204 = smul.u32 16, %s20
        %v205 = vld [vmem:[#allocation2] sm:$0x1]
        %v206 = vld [vmem:[%s182] sm:$0xf]
        %v207 = vld [vmem:[%s182 + $0x4] sm:$0xf]
        %v208 = vld [vmem:[%s182 + $0x8] sm:$0xf]
        %v209 = vld [vmem:[%s182 + $0xc] sm:$0xf]
        %v210 = vld [vmem:[%s182 + $0x10] sm:$0xf]
        %v211 = vld [vmem:[%s182 + $0x14] sm:$0xf]
        %v212 = vld [vmem:[%s182 + $0x18] sm:$0xf]
        %v213 = vld [vmem:[%s182 + $0x1c] sm:$0xf]
        %v214 = vld [vmem:[%s182 + $0x20] sm:$0xf]
        %v215 = vld [vmem:[%s182 + $0x24] sm:$0xf]
        %v216 = vld [vmem:[%s182 + $0x28] sm:$0xf]
        %v217 = vld [vmem:[%s182 + $0x2c] sm:$0xf]
        %v218 = vld [vmem:[%s182 + $0x30] sm:$0xf]
        %v219 = vld [vmem:[%s182 + $0x34] sm:$0xf]
        %v220 = vld [vmem:[%s182 + $0x38] sm:$0xf]
        %v221 = vld [vmem:[%s182 + $0x3c] sm:$0xf]
        %v222 = vld [vmem:[%s182 + $0x40] sm:$0xf]
        %v223 = vld [vmem:[%s182 + $0x44] sm:$0xf]
        %v224 = vld [vmem:[%s182 + $0x48] sm:$0xf]
        %v225 = vld [vmem:[%s182 + $0x4c] sm:$0xf]
        %v226 = vld [vmem:[%s182 + $0x50] sm:$0xf]
        %v227 = vld [vmem:[%s182 + $0x54] sm:$0xf]
        %v228 = vld [vmem:[%s182 + $0x58] sm:$0xf]
        %v229 = vld [vmem:[%s182 + $0x5c] sm:$0xf]
        %v230 = vld [vmem:[%s182 + $0x60] sm:$0xf]
        %v231 = vld [vmem:[%s182 + $0x64] sm:$0xf]
        %v232 = vld [vmem:[%s182 + $0x68] sm:$0xf]
        %v233 = vld [vmem:[%s182 + $0x6c] sm:$0xf]
        %v234 = vld [vmem:[%s182 + $0x70] sm:$0xf]
        %v235 = vld [vmem:[%s182 + $0x74] sm:$0xf]
        %v236 = vld [vmem:[%s182 + $0x78] sm:$0xf]
        %v237 = vld [vmem:[%s182 + $0x7c] sm:$0xf]
        %v238 = vld [vmem:[%s182 + $0x80] sm:$0xf]
        %v239 = vld [vmem:[%s182 + $0x84] sm:$0xf]
        %v240 = vld [vmem:[%s182 + $0x88] sm:$0xf]
        %v241 = vld [vmem:[%s182 + $0x8c] sm:$0xf]
        %v242 = vld [vmem:[%s182 + $0x90] sm:$0xf]
        %v243 = vld [vmem:[%s182 + $0x94] sm:$0xf]
        %v244 = vld [vmem:[%s182 + $0x98] sm:$0xf]
        %v245 = vld [vmem:[%s182 + $0x9c] sm:$0xf]
        %v246 = vld [vmem:[%s182 + $0xa0] sm:$0xf]
        %v247 = vld [vmem:[%s182 + $0xa4] sm:$0xf]
        %v248 = vld [vmem:[%s182 + $0xa8] sm:$0xf]
        %v249 = vld [vmem:[%s182 + $0xac] sm:$0xf]
        %v250 = vld [vmem:[%s182 + $0xb0] sm:$0xf]
        %v251 = vld [vmem:[%s182 + $0xb4] sm:$0xf]
        %v252 = vld [vmem:[%s182 + $0xb8] sm:$0xf]
        %v253 = vld [vmem:[%s182 + $0xbc] sm:$0xf]
        %v254 = vld [vmem:[%s182 + $0xc0] sm:$0xf]
        %v255 = vld [vmem:[%s182 + $0xc4] sm:$0xf]
        %v256 = vld [vmem:[%s182 + $0xc8] sm:$0xf]
        %v257 = vld [vmem:[%s182 + $0xcc] sm:$0xf]
        %v258 = vld [vmem:[%s182 + $0xd0] sm:$0xf]
        %v259 = vld [vmem:[%s182 + $0xd4] sm:$0xf]
        %v260 = vld [vmem:[%s182 + $0xd8] sm:$0xf]
        %v261 = vld [vmem:[%s182 + $0xdc] sm:$0xf]
        %v262 = vld [vmem:[%s182 + $0xe0] sm:$0xf]
        %v263 = vld [vmem:[%s182 + $0xe4] sm:$0xf]
        %v264 = vld [vmem:[%s182 + $0xe8] sm:$0xf]
        %v265 = vld [vmem:[%s182 + $0xec] sm:$0xf]
        %v266 = vld [vmem:[%s182 + $0xf0] sm:$0xf]
        %v267 = vld [vmem:[%s182 + $0xf4] sm:$0xf]
        %v268 = vld [vmem:[%s182 + $0xf8] sm:$0xf]
        %v269 = vld [vmem:[%s182 + $0xfc] sm:$0xf]
        %v270 = vunpack.c.l.bf16 %v206
        %v271 = vunpack.c.l.bf16 %v207
        %v272 = vunpack.c.l.bf16 %v208
        %v273 = vunpack.c.l.bf16 %v209
        %v274 = vunpack.c.l.bf16 %v210
        %v275 = vunpack.c.l.bf16 %v211
        %v276 = vunpack.c.l.bf16 %v212
        %v277 = vunpack.c.l.bf16 %v213
        %v278 = vunpack.c.l.bf16 %v214
        %v279 = vunpack.c.l.bf16 %v215
        %v280 = vunpack.c.l.bf16 %v216
        %v281 = vunpack.c.l.bf16 %v217
        %v282 = vunpack.c.l.bf16 %v218
        %v283 = vunpack.c.l.bf16 %v219
        %v284 = vunpack.c.l.bf16 %v220
        %v285 = vunpack.c.l.bf16 %v221
        %v286 = vunpack.c.l.bf16 %v222
        %v287 = vunpack.c.l.bf16 %v223
        %v288 = vunpack.c.l.bf16 %v224
        %v289 = vunpack.c.l.bf16 %v225
        %v290 = vunpack.c.l.bf16 %v226
        %v291 = vunpack.c.l.bf16 %v227
        %v292 = vunpack.c.l.bf16 %v228
        %v293 = vunpack.c.l.bf16 %v229
        %v294 = vunpack.c.l.bf16 %v230
        %v295 = vunpack.c.l.bf16 %v231
        %v296 = vunpack.c.l.bf16 %v232
        %v297 = vunpack.c.l.bf16 %v233
        %v298 = vunpack.c.l.bf16 %v234
        %v299 = vunpack.c.l.bf16 %v235
        %v300 = vunpack.c.l.bf16 %v236
        %v301 = vunpack.c.l.bf16 %v237
        %v302 = vunpack.c.l.bf16 %v238
        %v303 = vunpack.c.l.bf16 %v239
        %v304 = vunpack.c.l.bf16 %v240
        %v305 = vunpack.c.l.bf16 %v241
        %v306 = vunpack.c.l.bf16 %v242
        %v307 = vunpack.c.l.bf16 %v243
        %v308 = vunpack.c.l.bf16 %v244
        %v309 = vunpack.c.l.bf16 %v245
        %v310 = vunpack.c.l.bf16 %v246
        %v311 = vunpack.c.l.bf16 %v247
        %v312 = vunpack.c.l.bf16 %v248
        %v313 = vunpack.c.l.bf16 %v249
        %v314 = vunpack.c.l.bf16 %v250
        %v315 = vunpack.c.l.bf16 %v251
        %v316 = vunpack.c.l.bf16 %v252
        %v317 = vunpack.c.l.bf16 %v253
        %v318 = vunpack.c.l.bf16 %v254
        %v319 = vunpack.c.l.bf16 %v255
        %v320 = vunpack.c.l.bf16 %v256
        %v321 = vunpack.c.l.bf16 %v257
        %v322 = vunpack.c.l.bf16 %v258
        %v323 = vunpack.c.l.bf16 %v259
        %v324 = vunpack.c.l.bf16 %v260
        %v325 = vunpack.c.l.bf16 %v261
        %v326 = vunpack.c.l.bf16 %v262
        %v327 = vunpack.c.l.bf16 %v263
        %v328 = vunpack.c.l.bf16 %v264
        %v329 = vunpack.c.l.bf16 %v265
        %v330 = vunpack.c.l.bf16 %v266
        %v331 = vunpack.c.l.bf16 %v267
        %v332 = vunpack.c.l.bf16 %v268
        %v333 = vunpack.c.l.bf16 %v269
        %v335 = vperm.slane %v205, 0
        %v337 = vmul.f32 %v270, %v335
        %v338 = vmul.f32 %v271, %v335
        %v339 = vmul.f32 %v272, %v335
        %v340 = vmul.f32 %v273, %v335
        %v341 = vmul.f32 %v274, %v335
        %v342 = vmul.f32 %v275, %v335
        %v343 = vmul.f32 %v276, %v335
        %v344 = vmul.f32 %v277, %v335
        %v345 = vmul.f32 %v278, %v335
        %v346 = vmul.f32 %v279, %v335
        %v347 = vmul.f32 %v280, %v335
        %v348 = vmul.f32 %v281, %v335
        %v349 = vmul.f32 %v282, %v335
        %v350 = vmul.f32 %v283, %v335
        %v351 = vmul.f32 %v284, %v335
        %v352 = vmul.f32 %v285, %v335
        %v353 = vmul.f32 %v286, %v335
        %v354 = vmul.f32 %v287, %v335
        %v355 = vmul.f32 %v288, %v335
        %v356 = vmul.f32 %v289, %v335
        %v357 = vmul.f32 %v290, %v335
        %v358 = vmul.f32 %v291, %v335
        %v359 = vmul.f32 %v292, %v335
        %v360 = vmul.f32 %v293, %v335
        %v361 = vmul.f32 %v294, %v335
        %v362 = vmul.f32 %v295, %v335
        %v363 = vmul.f32 %v296, %v335
        %v364 = vmul.f32 %v297, %v335
        %v365 = vmul.f32 %v298, %v335
        %v366 = vmul.f32 %v299, %v335
        %v367 = vmul.f32 %v300, %v335
        %v368 = vmul.f32 %v301, %v335
        %v369 = vmul.f32 %v302, %v335
        %v370 = vmul.f32 %v303, %v335
        %v371 = vmul.f32 %v304, %v335
        %v372 = vmul.f32 %v305, %v335
        %v373 = vmul.f32 %v306, %v335
        %v374 = vmul.f32 %v307, %v335
        %v375 = vmul.f32 %v308, %v335
        %v376 = vmul.f32 %v309, %v335
        %v377 = vmul.f32 %v310, %v335
        %v378 = vmul.f32 %v311, %v335
        %v379 = vmul.f32 %v312, %v335
        %v380 = vmul.f32 %v313, %v335
        %v381 = vmul.f32 %v314, %v335
        %v382 = vmul.f32 %v315, %v335
        %v383 = vmul.f32 %v316, %v335
        %v384 = vmul.f32 %v317, %v335
        %v385 = vmul.f32 %v318, %v335
        %v386 = vmul.f32 %v319, %v335
        %v387 = vmul.f32 %v320, %v335
        %v388 = vmul.f32 %v321, %v335
        %v389 = vmul.f32 %v322, %v335
        %v390 = vmul.f32 %v323, %v335
        %v391 = vmul.f32 %v324, %v335
        %v392 = vmul.f32 %v325, %v335
        %v393 = vmul.f32 %v326, %v335
        %v394 = vmul.f32 %v327, %v335
        %v395 = vmul.f32 %v328, %v335
        %v396 = vmul.f32 %v329, %v335
        %v397 = vmul.f32 %v330, %v335
        %v398 = vmul.f32 %v331, %v335
        %v399 = vmul.f32 %v332, %v335
        %v400 = vmul.f32 %v333, %v335
        %401 = vadd.xlane.f32.xlu0 %v337
        %v402 = vpop.xlane.xlu0 %401
        %403 = vadd.xlane.f32.xlu0 %v338
        %v404 = vpop.xlane.xlu0 %403
        %405 = vadd.xlane.f32.xlu0 %v339
        %v406 = vpop.xlane.xlu0 %405
        %407 = vadd.xlane.f32.xlu0 %v340
        %v408 = vpop.xlane.xlu0 %407
        %409 = vadd.xlane.f32.xlu0 %v341
        %v410 = vpop.xlane.xlu0 %409
        %411 = vadd.xlane.f32.xlu0 %v342
        %v412 = vpop.xlane.xlu0 %411
        %413 = vadd.xlane.f32.xlu0 %v343
        %v414 = vpop.xlane.xlu0 %413
        %415 = vadd.xlane.f32.xlu0 %v344
        %v416 = vpop.xlane.xlu0 %415
        %417 = vadd.xlane.f32.xlu0 %v345
        %v418 = vpop.xlane.xlu0 %417
        %419 = vadd.xlane.f32.xlu0 %v346
        %v420 = vpop.xlane.xlu0 %419
        %421 = vadd.xlane.f32.xlu0 %v347
        %v422 = vpop.xlane.xlu0 %421
        %423 = vadd.xlane.f32.xlu0 %v348
        %v424 = vpop.xlane.xlu0 %423
        %425 = vadd.xlane.f32.xlu0 %v349
        %v426 = vpop.xlane.xlu0 %425
        %427 = vadd.xlane.f32.xlu0 %v350
        %v428 = vpop.xlane.xlu0 %427
        %429 = vadd.xlane.f32.xlu0 %v351
        %v430 = vpop.xlane.xlu0 %429
        %431 = vadd.xlane.f32.xlu0 %v352
        %v432 = vpop.xlane.xlu0 %431
        %433 = vadd.xlane.f32.xlu0 %v353
        %v434 = vpop.xlane.xlu0 %433
        %435 = vadd.xlane.f32.xlu0 %v354
        %v436 = vpop.xlane.xlu0 %435
        %437 = vadd.xlane.f32.xlu0 %v355
        %v438 = vpop.xlane.xlu0 %437
        %439 = vadd.xlane.f32.xlu0 %v356
        %v440 = vpop.xlane.xlu0 %439
        %441 = vadd.xlane.f32.xlu0 %v357
        %v442 = vpop.xlane.xlu0 %441
        %443 = vadd.xlane.f32.xlu0 %v358
        %v444 = vpop.xlane.xlu0 %443
        %445 = vadd.xlane.f32.xlu0 %v359
        %v446 = vpop.xlane.xlu0 %445
        %447 = vadd.xlane.f32.xlu0 %v360
        %v448 = vpop.xlane.xlu0 %447
        %449 = vadd.xlane.f32.xlu0 %v361
        %v450 = vpop.xlane.xlu0 %449
        %451 = vadd.xlane.f32.xlu0 %v362
        %v452 = vpop.xlane.xlu0 %451
        %453 = vadd.xlane.f32.xlu0 %v363
        %v454 = vpop.xlane.xlu0 %453
        %455 = vadd.xlane.f32.xlu0 %v364
        %v456 = vpop.xlane.xlu0 %455
        %457 = vadd.xlane.f32.xlu0 %v365
        %v458 = vpop.xlane.xlu0 %457
        %459 = vadd.xlane.f32.xlu0 %v366
        %v460 = vpop.xlane.xlu0 %459
        %461 = vadd.xlane.f32.xlu0 %v367
        %v462 = vpop.xlane.xlu0 %461
        %463 = vadd.xlane.f32.xlu0 %v368
        %v464 = vpop.xlane.xlu0 %463
        %465 = vadd.xlane.f32.xlu0 %v369
        %v466 = vpop.xlane.xlu0 %465
        %467 = vadd.xlane.f32.xlu0 %v370
        %v468 = vpop.xlane.xlu0 %467
        %469 = vadd.xlane.f32.xlu0 %v371
        %v470 = vpop.xlane.xlu0 %469
        %471 = vadd.xlane.f32.xlu0 %v372
        %v472 = vpop.xlane.xlu0 %471
        %473 = vadd.xlane.f32.xlu0 %v373
        %v474 = vpop.xlane.xlu0 %473
        %475 = vadd.xlane.f32.xlu0 %v374
        %v476 = vpop.xlane.xlu0 %475
        %477 = vadd.xlane.f32.xlu0 %v375
        %v478 = vpop.xlane.xlu0 %477
        %479 = vadd.xlane.f32.xlu0 %v376
        %v480 = vpop.xlane.xlu0 %479
        %481 = vadd.xlane.f32.xlu0 %v377
        %v482 = vpop.xlane.xlu0 %481
        %483 = vadd.xlane.f32.xlu0 %v378
        %v484 = vpop.xlane.xlu0 %483
        %485 = vadd.xlane.f32.xlu0 %v379
        %v486 = vpop.xlane.xlu0 %485
        %487 = vadd.xlane.f32.xlu0 %v380
        %v488 = vpop.xlane.xlu0 %487
        %489 = vadd.xlane.f32.xlu0 %v381
        %v490 = vpop.xlane.xlu0 %489
        %491 = vadd.xlane.f32.xlu0 %v382
        %v492 = vpop.xlane.xlu0 %491
        %493 = vadd.xlane.f32.xlu0 %v383
        %v494 = vpop.xlane.xlu0 %493
        %495 = vadd.xlane.f32.xlu0 %v384
        %v496 = vpop.xlane.xlu0 %495
        %497 = vadd.xlane.f32.xlu0 %v385
        %v498 = vpop.xlane.xlu0 %497
        %499 = vadd.xlane.f32.xlu0 %v386
        %v500 = vpop.xlane.xlu0 %499
        %501 = vadd.xlane.f32.xlu0 %v387
        %v502 = vpop.xlane.xlu0 %501
        %503 = vadd.xlane.f32.xlu0 %v388
        %v504 = vpop.xlane.xlu0 %503
        %505 = vadd.xlane.f32.xlu0 %v389
        %v506 = vpop.xlane.xlu0 %505
        %507 = vadd.xlane.f32.xlu0 %v390
        %v508 = vpop.xlane.xlu0 %507
        %509 = vadd.xlane.f32.xlu0 %v391
        %v510 = vpop.xlane.xlu0 %509
        %511 = vadd.xlane.f32.xlu0 %v392
        %v512 = vpop.xlane.xlu0 %511
        %513 = vadd.xlane.f32.xlu0 %v393
        %v514 = vpop.xlane.xlu0 %513
        %515 = vadd.xlane.f32.xlu0 %v394
        %v516 = vpop.xlane.xlu0 %515
        %517 = vadd.xlane.f32.xlu0 %v395
        %v518 = vpop.xlane.xlu0 %517
        %519 = vadd.xlane.f32.xlu0 %v396
        %v520 = vpop.xlane.xlu0 %519
        %521 = vadd.xlane.f32.xlu0 %v397
        %v522 = vpop.xlane.xlu0 %521
        %523 = vadd.xlane.f32.xlu0 %v398
        %v524 = vpop.xlane.xlu0 %523
        %525 = vadd.xlane.f32.xlu0 %v399
        %v526 = vpop.xlane.xlu0 %525
        %527 = vadd.xlane.f32.xlu0 %v400
        %v528 = vpop.xlane.xlu0 %527
        %v593 = vlaneseq
        %v594 = vand.u32 %v593, 127
        %v595 = vperm.slane %v402, %v594
        %v596 = vadd.s32 %v594, 4294967288
        %v597 = vperm.slane %v404, %v596
        %vm598 = vcmask 130112
        %v599 = vsel %vm598, %v597, %v595
        %v600 = vadd.s32 %v594, 4294967280
        %v601 = vperm.slane %v406, %v600
        %vm602 = vcmask 195712
        %v603 = vsel %vm602, %v601, %v599
        %v604 = vadd.s32 %v594, 4294967272
        %v605 = vperm.slane %v408, %v604
        %vm606 = vcmask 261312
        %v607 = vsel %vm606, %v605, %v603
        %v608 = vadd.s32 %v594, 4294967264
        %v609 = vperm.slane %v410, %v608
        %vm610 = vcmask 326912
        %v611 = vsel %vm610, %v609, %v607
        %v612 = vadd.s32 %v594, 4294967256
        %v613 = vperm.slane %v412, %v612
        %vm614 = vcmask 392512
        %v615 = vsel %vm614, %v613, %v611
        %v616 = vadd.s32 %v594, 4294967248
        %v617 = vperm.slane %v414, %v616
        %vm618 = vcmask 458112
        %v619 = vsel %vm618, %v617, %v615
        %v620 = vadd.s32 %v594, 4294967240
        %v621 = vperm.slane %v416, %v620
        %vm622 = vcmask 523712
        %v623 = vsel %vm622, %v621, %v619
        %v624 = vadd.s32 %v594, 4294967232
        %v625 = vperm.slane %v418, %v624
        %vm626 = vcmask 589312
        %v627 = vsel %vm626, %v625, %v623
        %v628 = vadd.s32 %v594, 4294967224
        %v629 = vperm.slane %v420, %v628
        %vm630 = vcmask 654912
        %v631 = vsel %vm630, %v629, %v627
        %v632 = vadd.s32 %v594, 4294967216
        %v633 = vperm.slane %v422, %v632
        %vm634 = vcmask 720512
        %v635 = vsel %vm634, %v633, %v631
        %v636 = vadd.s32 %v594, 4294967208
        %v637 = vperm.slane %v424, %v636
        %vm638 = vcmask 786112
        %v639 = vsel %vm638, %v637, %v635
        %v640 = vadd.s32 %v594, 4294967200
        %v641 = vperm.slane %v426, %v640
        %vm642 = vcmask 851712
        %v643 = vsel %vm642, %v641, %v639
        %v644 = vadd.s32 %v594, 4294967192
        %v645 = vperm.slane %v428, %v644
        %vm646 = vcmask 917312
        %v647 = vsel %vm646, %v645, %v643
        %v648 = vadd.s32 %v594, 4294967184
        %v649 = vperm.slane %v430, %v648
        %vm650 = vcmask 982912
        %v651 = vsel %vm650, %v649, %v647
        %v652 = vadd.s32 %v594, 4294967176
        %v653 = vperm.slane %v432, %v652
        %vm654 = vcmask 1048512
        %v655 = vsel %vm654, %v653, %v651
        %v656 = vperm.slane %v434, %v594
        %v657 = vperm.slane %v436, %v596
        %v658 = vsel %vm598, %v657, %v656
        %v659 = vperm.slane %v438, %v600
        %v660 = vsel %vm602, %v659, %v658
        %v661 = vperm.slane %v440, %v604
        %v662 = vsel %vm606, %v661, %v660
        %v663 = vperm.slane %v442, %v608
        %v664 = vsel %vm610, %v663, %v662
        %v665 = vperm.slane %v444, %v612
        %v666 = vsel %vm614, %v665, %v664
        %v667 = vperm.slane %v446, %v616
        %v668 = vsel %vm618, %v667, %v666
        %v669 = vperm.slane %v448, %v620
        %v670 = vsel %vm622, %v669, %v668
        %v671 = vperm.slane %v450, %v624
        %v672 = vsel %vm626, %v671, %v670
        %v673 = vperm.slane %v452, %v628
        %v674 = vsel %vm630, %v673, %v672
        %v675 = vperm.slane %v454, %v632
        %v676 = vsel %vm634, %v675, %v674
        %v677 = vperm.slane %v456, %v636
        %v678 = vsel %vm638, %v677, %v676
        %v679 = vperm.slane %v458, %v640
        %v680 = vsel %vm642, %v679, %v678
        %v681 = vperm.slane %v460, %v644
        %v682 = vsel %vm646, %v681, %v680
        %v683 = vperm.slane %v462, %v648
        %v684 = vsel %vm650, %v683, %v682
        %v685 = vperm.slane %v464, %v652
        %v686 = vsel %vm654, %v685, %v684
        %v687 = vperm.slane %v466, %v594
        %v688 = vperm.slane %v468, %v596
        %v689 = vsel %vm598, %v688, %v687
        %v690 = vperm.slane %v470, %v600
        %v691 = vsel %vm602, %v690, %v689
        %v692 = vperm.slane %v472, %v604
        %v693 = vsel %vm606, %v692, %v691
        %v694 = vperm.slane %v474, %v608
        %v695 = vsel %vm610, %v694, %v693
        %v696 = vperm.slane %v476, %v612
        %v697 = vsel %vm614, %v696, %v695
        %v698 = vperm.slane %v478, %v616
        %v699 = vsel %vm618, %v698, %v697
        %v700 = vperm.slane %v480, %v620
        %v701 = vsel %vm622, %v700, %v699
        %v702 = vperm.slane %v482, %v624
        %v703 = vsel %vm626, %v702, %v701
        %v704 = vperm.slane %v484, %v628
        %v705 = vsel %vm630, %v704, %v703
        %v706 = vperm.slane %v486, %v632
        %v707 = vsel %vm634, %v706, %v705
        %v708 = vperm.slane %v488, %v636
        %v709 = vsel %vm638, %v708, %v707
        %v710 = vperm.slane %v490, %v640
        %v711 = vsel %vm642, %v710, %v709
        %v712 = vperm.slane %v492, %v644
        %v713 = vsel %vm646, %v712, %v711
        %v714 = vperm.slane %v494, %v648
        %v715 = vsel %vm650, %v714, %v713
        %v716 = vperm.slane %v496, %v652
        %v717 = vsel %vm654, %v716, %v715
        %v718 = vperm.slane %v498, %v594
        %v719 = vperm.slane %v500, %v596
        %v720 = vsel %vm598, %v719, %v718
        %v721 = vperm.slane %v502, %v600
        %v722 = vsel %vm602, %v721, %v720
        %v723 = vperm.slane %v504, %v604
        %v724 = vsel %vm606, %v723, %v722
        %v725 = vperm.slane %v506, %v608
        %v726 = vsel %vm610, %v725, %v724
        %v727 = vperm.slane %v508, %v612
        %v728 = vsel %vm614, %v727, %v726
        %v729 = vperm.slane %v510, %v616
        %v730 = vsel %vm618, %v729, %v728
        %v731 = vperm.slane %v512, %v620
        %v732 = vsel %vm622, %v731, %v730
        %v733 = vperm.slane %v514, %v624
        %v734 = vsel %vm626, %v733, %v732
        %v735 = vperm.slane %v516, %v628
        %v736 = vsel %vm630, %v735, %v734
        %v737 = vperm.slane %v518, %v632
        %v738 = vsel %vm634, %v737, %v736
        %v739 = vperm.slane %v520, %v636
        %v740 = vsel %vm638, %v739, %v738
        %v741 = vperm.slane %v522, %v640
        %v742 = vsel %vm642, %v741, %v740
        %v743 = vperm.slane %v524, %v644
        %v744 = vsel %vm646, %v743, %v742
        %v745 = vperm.slane %v526, %v648
        %v746 = vsel %vm650, %v745, %v744
        %v747 = vperm.slane %v528, %v652
        %v748 = vsel %vm654, %v747, %v746
        %vm749 = vcmask 1041409
        %v750 = vsel %vm749, %v686, %v655
        %vm751 = vcmask 1042434
        %v752 = vsel %vm751, %v717, %v750
        %vm753 = vcmask 1043459
        %v754 = vsel %vm753, %v748, %v752
        %756 = vst [vmem:[%s203] sm:$0xf] %v754
        %s757 = sand.u32 %s75, 1
        %s758 = scalar_lea.sflag [#allocation4], %s757
        %s759 = sand.u32 %s75, 1
        %s760 = smul.addr %s759, 4
        %s761 = scalar_lea.vmem [#allocation7], %s760
        // Predicated region
        $region37: #{tpu_custom_call.1} parent=27 // pred_check
          %p762 = pneg %p85
        $region38: #{tpu_custom_call.1} parent=27 // pred_check_branch
          %764 = sbr.rel (%p762) target = $region40
        $region39: #{tpu_custom_call.1} parent=27 // pred_region
          %766 = vsyncadd %s758, 0
          %s767 = smul.addr %s20, 4
          %s768 = scalar_lea.hbm %s2, %s767
          %s770 = sshll.u32 %s761, 4
          %s771 = int_to_ptr.vmem [resolvable:$true] %s770
          %s772 = sshll.u32 %s768, 4
          %s773 = int_to_ptr.hbm [resolvable:$true] %s772
          %775 = dma.vmem_to_hbm [thread:$0]  %s771, 64, %s773, %s758
        $region40: #{tpu_custom_call.1} parent=27 // pred_fallthru
          _
      $region28: #{tpu_custom_call.1} parent=5 // pred_fallthru
        _
      %p776 = scmp.le.s32.totalorder 2, %s15
      // Predicated region
      $region41: #{tpu_custom_call.1} parent=5 // pred_check
        %p777 = pneg %p776
      $region42: #{tpu_custom_call.1} parent=5 // pred_check_branch
        %779 = sbr.rel (%p777) target = $region44
      $region43: #{tpu_custom_call.1} parent=5 // pred_region
        %s780 = ssub.s32 %s15, 2
        // Predicated region
        $region45: #{tpu_custom_call.1} parent=43 // pred_check
          %p781 = pneg %p91
        $region46: #{tpu_custom_call.1} parent=43 // pred_check_branch
          %783 = sbr.rel (%p781) target = $region48
        $region47: #{tpu_custom_call.1} parent=43 // pred_region
          %s784 = sand.u32 %s76, 1
          %s785 = scalar_lea.sflag [#allocation4], %s784
          %s786 = sand.u32 %s76, 1
          %s787 = smul.addr %s786, 4
          %s788 = scalar_lea.vmem [#allocation7], %s787
          %790 = dma.done %s785, 64
        $region48: #{tpu_custom_call.1} parent=43 // pred_fallthru
          _
      $region44: #{tpu_custom_call.1} parent=5 // pred_fallthru
        _
    $region6: #{tpu_custom_call.1} parent=1 // loop_footer
      %s19 = sadd.s32 1, %s15
    $region7: #{tpu_custom_call.1} parent=1 // loop_footer_branch
      %14 = sbr.rel target = $region3
    $region8: #{tpu_custom_call.1} parent=1 // loop_exit
      _
    %791 = vsyncpa [#allocation3], 1
    %s792 = scalar_lea.sflag [#allocation3], 1
    %793 = vsyncpa %s792, 1
    %794 = vsyncpa [#allocation6], 1
    %s795 = scalar_lea.sflag [#allocation6], 1
    %796 = vsyncpa %s795, 1
    %797 = vsyncpa [#allocation4], 1
    %s798 = scalar_lea.sflag [#allocation4], 1
    %799 = vsyncpa %s798, 1

</llo_original>
